<compile_context>
chip_gen: v5e
topology: v5e:2x2
jax: 0.10.0
libtpu: 0.0.40
codegen_flags: <defaults>
</compile_context>

<pallas_src>
import jax
import jax.numpy as jnp
from jax.experimental import pallas as pl
from jax.experimental.pallas import tpu as pltpu


def clip_embedding(tokens, token_embedding, position_embedding, *,
                   max_tile=512, window=32, unroll=8):
    """Pallas TPU forward of CLIPEmbedding.

    tokens:             (B, T) integer token ids
    token_embedding:    (V, D) embedding table
    position_embedding: (T, D) learned positional embedding
    returns:            (B, T, D) = token_embedding[tokens] + position_embedding
    """
    B, T = tokens.shape
    V, D = token_embedding.shape
    assert position_embedding.shape == (T, D)

    # Matches torch's in-place `x += position_embedding` (result dtype = table
    # dtype).  If the position embedding were higher precision this would be a
    # (documented) slight deviation from jnp promotion.
    out_dtype = token_embedding.dtype

    # Token-tile: whole T when it fits in one tile (exact shapes, no padding /
    # masking anywhere), otherwise a multiple-of-8 tile.
    if T <= max_tile:
        t_block = T
    else:
        t_block = max(8, (max_tile // 8) * 8)
    nt = pl.cdiv(T, t_block)          # python int
    t_pad = nt * t_block

    n_pre = min(window, t_block)      # row DMAs kept in flight
    n_bulk = t_block - n_pre
    n_chunks = n_bulk // unroll

    tokens = jnp.clip(tokens.astype(jnp.int32), 0, V - 1)
    position_embedding = position_embedding.astype(out_dtype)
    if t_pad != T:
        # Only the tiny inputs get padded; the (B, T, D) output never does.
        tokens = jnp.pad(tokens, ((0, 0), (0, t_pad - T)))
        position_embedding = jnp.pad(position_embedding,
                                     ((0, t_pad - T), (0, 0)))
    tokens_flat = tokens.reshape(-1)  # 1-D SMEM: no (8,128) padding blow-up

    def kernel(tok_ref, emb_hbm, pos_ref, out_ref, gather_buf, sems):
        b = pl.program_id(0)
        t = pl.program_id(1)
        slot = t % 2
        t0 = t * t_block
        base = b * t_pad + t0

        def start_row(dst_slot, row, tok):
            pltpu.make_async_copy(
                emb_hbm.at[pl.ds(tok, 1), :],
                gather_buf.at[dst_slot, pl.ds(row, 1), :],
                sems.at[dst_slot, row % n_pre],
            ).start()

        def wait_row(dst_slot, row):
            # Dummy descriptor: only its (shape, semaphore) matter; keep the
            # (1, D) extent in lockstep with the copies issued by start_row.
            pltpu.make_async_copy(
                emb_hbm.at[pl.ds(0, 1), :],
                gather_buf.at[0, pl.ds(0, 1), :],
                sems.at[dst_slot, row % n_pre],
            ).wait()

        # ---- Prime: only when the previous grid step did not prefetch for us
        # (i.e. the first token-tile of this batch row).
        def prime():
            for i in range(n_pre):
                start_row(slot, i, tok_ref[base + i])

        if nt == 1:
            prime()
        else:
            pl.when(t == 0)(prime)

        # ---- Bulk: retire row i, immediately refill row i + n_pre.  The SMEM
        # token id for the refill is read *before* the wait.
        def bulk_step(i):
            nxt_tok = tok_ref[base + i + n_pre]
            wait_row(slot, i)
            start_row(slot, i + n_pre, nxt_tok)

        if n_chunks > 0:
            @pl.loop(0, n_chunks)
            def _(c):
                i0 = pl.multiple_of(c * unroll, unroll)
                for j in range(unroll):
                    bulk_step(i0 + j)

        for i in range(n_chunks * unroll, n_bulk):
            bulk_step(i)

        # ---- Cross-step prefetch: start the first n_pre row DMAs of the next
        # token tile (same batch row, guaranteed to be the next invocation on
        # this core because the t axis is "arbitrary") into the other buffer
        # slot, so its prime latency hides under this tile's tail + add+store.
        if nt > 1:
            @pl.when(t + 1 < nt)
            def _():
                nxt_slot = 1 - slot
                nxt_base = base + t_block
                for i in range(n_pre):
                    start_row(nxt_slot, i, tok_ref[nxt_base + i])

        # ---- Tail: pure waits for the final n_pre rows of this tile.
        for i in range(n_bulk, t_block):
            wait_row(slot, i)

        # ---- One vectorized add over the whole (t_block, D) tile.
        pos_tile = pos_ref[pl.ds(t0, t_block), :]
        out_ref[...] = (gather_buf[slot] + pos_tile).reshape(out_ref.shape)

    grid = (B, nt)
    grid_spec = pltpu.PrefetchScalarGridSpec(
        num_scalar_prefetch=1,
        grid=grid,
        in_specs=[
            # Embedding table stays in HBM; rows are DMA-gathered manually.
            pl.BlockSpec(memory_space=pl.ANY),
            # Position embedding: constant index -> fetched once, VMEM-resident.
            pl.BlockSpec((t_pad, D), lambda b, t, tok: (0, 0)),
        ],
        out_specs=pl.BlockSpec((1, t_block, D), lambda b, t, tok: (b, t, 0)),
        scratch_shapes=[
            pltpu.VMEM((2, t_block, D), out_dtype),     # double-buffered gather
            pltpu.SemaphoreType.DMA((2, n_pre)),
        ],
    )

    itemsize = jnp.dtype(out_dtype).itemsize
    cost = pl.CostEstimate(
        flops=B * T * D,  # one add per output element
        transcendentals=0,
        bytes_accessed=(
            2 * B * T * D * itemsize   # gathered table rows + output write
            + t_pad * D * itemsize     # position embedding (fetched once)
            + B * t_pad * 4            # token ids
        ),
    )

    return pl.pallas_call(
        kernel,
        out_shape=jax.ShapeDtypeStruct((B, T, D), out_dtype),
        grid_spec=grid_spec,
        compiler_params=pltpu.CompilerParams(
            # Batch axis feeds megacore; the token-tile axis must stay in-order
            # ("arbitrary") for the cross-step gather prefetch to be valid.
            dimension_semantics=("parallel", "arbitrary"),
        ),
        cost_estimate=cost,
    )(tokens_flat, token_embedding, position_embedding)


if __name__ == "__main__":
    # Small shapes consistent with the module.
    vocab_size = 64
    n_embeddings = 128
    n_tokens = 8
    batch = 2

    key = jax.random.PRNGKey(0)
    k_tok, k_emb, k_pos = jax.random.split(key, 3)

    tokens = jax.random.randint(
        k_tok, (batch, n_tokens), minval=0, maxval=vocab_size, dtype=jnp.int32
    )
    token_embedding = jax.random.normal(
        k_emb, (vocab_size, n_embeddings), dtype=jnp.float32
    )
    position_embedding = jax.random.normal(
        k_pos, (n_tokens, n_embeddings), dtype=jnp.float32
    )

    out = clip_embedding(tokens, token_embedding, position_embedding)
    out = jax.block_until_ready(out)

    # Reference check in plain JAX (same semantics as the PyTorch forward).
    ref = token_embedding[tokens] + position_embedding[None, :, :]
    assert out.shape == (batch, n_tokens, n_embeddings)
    assert jnp.allclose(out, ref), "mismatch vs reference"

    print("KERNEL_OK")
</pallas_src>

<mosaic_0001>
module attributes {stable_mosaic.version = 11 : i64} {
  func.func @kernel(%arg0: i32, %arg1: i32, %arg2: memref<16xi32, #tpu.memory_space<smem>>, %arg3: memref<64x128xf32, #tpu.memory_space<any>>, %arg4: memref<8x128xf32, #tpu.memory_space<vmem>>, %arg5: memref<1x8x128xf32, #tpu.memory_space<vmem>>, %arg6: memref<2x8x128xf32, #tpu.memory_space<vmem>>, %arg7: memref<2x8x!tpu.dma_semaphore, #tpu.memory_space<semaphore_mem>>) attributes {dimension_semantics = [#tpu.dimension_semantics<parallel>, #tpu.dimension_semantics<arbitrary>], iteration_bounds = array<i64: 2, 1>, scalar_prefetch = 1 : i64, scratch_operands = 2 : i64, tpu.core_type = #tpu.core_type<tc>, window_params = [{}, {pipeline_mode = #tpu.pipeline_mode<synchronous>, transform_indices = @transform_1, window_bounds = array<i64: 8, 128>}, {transform_indices = @transform_2, window_bounds = array<i64: 1, 8, 128>}]} {
    %c2_i32 = arith.constant 2 : i32
    %c0_i32 = arith.constant 0 : i32
    %0 = arith.cmpi eq, %c2_i32, %c0_i32 : i32
    %c1_i32 = arith.constant 1 : i32
    %1 = arith.select %0, %c1_i32, %c2_i32 : i32
    %2 = arith.remsi %arg1, %1 : i32
    %c0_i32_0 = arith.constant 0 : i32
    %3 = arith.cmpi ne, %2, %c0_i32_0 : i32
    %c0_i32_1 = arith.constant 0 : i32
    %4 = arith.cmpi slt, %2, %c0_i32_1 : i32
    %c0_i32_2 = arith.constant 0 : i32
    %5 = arith.cmpi slt, %1, %c0_i32_2 : i32
    %6 = arith.xori %4, %5 : i1
    %7 = arith.andi %6, %3 : i1
    %8 = arith.addi %2, %1 : i32
    %9 = arith.select %7, %8, %2 : i32
    %c8_i32 = arith.constant 8 : i32
    %10 = arith.muli %arg1, %c8_i32 : i32
    %c8_i32_3 = arith.constant 8 : i32
    %11 = arith.muli %arg0, %c8_i32_3 : i32
    %12 = arith.addi %11, %10 : i32
    %c0_i32_4 = arith.constant 0 : i32
    %13 = arith.addi %12, %c0_i32_4 : i32
    %14 = arith.index_cast %13 : i32 to index
    %15 = memref.load %arg2[%14] : memref<16xi32, #tpu.memory_space<smem>>
    %c0_i32_5 = arith.constant 0 : i32
    %c0_i32_6 = arith.constant 0 : i32
    %16 = tpu.memref_slice %arg3[%15, %c0_i32_6] : memref<64x128xf32, #tpu.memory_space<any>> -> memref<1x128xf32, #tpu.memory_space<any>>
    %c0_i32_7 = arith.constant 0 : i32
    %c0_i32_8 = arith.constant 0 : i32
    %17 = tpu.memref_slice %arg6[%9, %c0_i32_7, %c0_i32_8] : memref<2x8x128xf32, #tpu.memory_space<vmem>> -> memref<1x1x128xf32, #tpu.memory_space<vmem>>
    %18 = tpu.memref_squeeze %17 : memref<1x1x128xf32, #tpu.memory_space<vmem>> -> memref<1x128xf32, #tpu.memory_space<vmem>>
    %19 = tpu.memref_slice %arg7[%9, %c0_i32_5] : memref<2x8x!tpu.dma_semaphore, #tpu.memory_space<semaphore_mem>> -> memref<1x1x!tpu.dma_semaphore, #tpu.memory_space<semaphore_mem>>
    %20 = tpu.memref_squeeze %19 : memref<1x1x!tpu.dma_semaphore, #tpu.memory_space<semaphore_mem>> -> memref<!tpu.dma_semaphore, #tpu.memory_space<semaphore_mem>>
    tpu.enqueue_dma source(%16 : memref<1x128xf32, #tpu.memory_space<any>>) target(%18 : memref<1x128xf32, #tpu.memory_space<vmem>>) target_semaphore(%20 : memref<!tpu.dma_semaphore, #tpu.memory_space<semaphore_mem>>)
    %c1_i32_9 = arith.constant 1 : i32
    %21 = arith.addi %12, %c1_i32_9 : i32
    %22 = arith.index_cast %21 : i32 to index
    %23 = memref.load %arg2[%22] : memref<16xi32, #tpu.memory_space<smem>>
    %c1_i32_10 = arith.constant 1 : i32
    %c0_i32_11 = arith.constant 0 : i32
    %24 = tpu.memref_slice %arg3[%23, %c0_i32_11] : memref<64x128xf32, #tpu.memory_space<any>> -> memref<1x128xf32, #tpu.memory_space<any>>
    %c1_i32_12 = arith.constant 1 : i32
    %c0_i32_13 = arith.constant 0 : i32
    %25 = tpu.memref_slice %arg6[%9, %c1_i32_12, %c0_i32_13] : memref<2x8x128xf32, #tpu.memory_space<vmem>> -> memref<1x1x128xf32, #tpu.memory_space<vmem>>
    %26 = tpu.memref_squeeze %25 : memref<1x1x128xf32, #tpu.memory_space<vmem>> -> memref<1x128xf32, #tpu.memory_space<vmem>>
    %27 = tpu.memref_slice %arg7[%9, %c1_i32_10] : memref<2x8x!tpu.dma_semaphore, #tpu.memory_space<semaphore_mem>> -> memref<1x1x!tpu.dma_semaphore, #tpu.memory_space<semaphore_mem>>
    %28 = tpu.memref_squeeze %27 : memref<1x1x!tpu.dma_semaphore, #tpu.memory_space<semaphore_mem>> -> memref<!tpu.dma_semaphore, #tpu.memory_space<semaphore_mem>>
    tpu.enqueue_dma source(%24 : memref<1x128xf32, #tpu.memory_space<any>>) target(%26 : memref<1x128xf32, #tpu.memory_space<vmem>>) target_semaphore(%28 : memref<!tpu.dma_semaphore, #tpu.memory_space<semaphore_mem>>)
    %c2_i32_14 = arith.constant 2 : i32
    %29 = arith.addi %12, %c2_i32_14 : i32
    %30 = arith.index_cast %29 : i32 to index
    %31 = memref.load %arg2[%30] : memref<16xi32, #tpu.memory_space<smem>>
    %c2_i32_15 = arith.constant 2 : i32
    %c0_i32_16 = arith.constant 0 : i32
    %32 = tpu.memref_slice %arg3[%31, %c0_i32_16] : memref<64x128xf32, #tpu.memory_space<any>> -> memref<1x128xf32, #tpu.memory_space<any>>
    %c2_i32_17 = arith.constant 2 : i32
    %c0_i32_18 = arith.constant 0 : i32
    %33 = tpu.memref_slice %arg6[%9, %c2_i32_17, %c0_i32_18] : memref<2x8x128xf32, #tpu.memory_space<vmem>> -> memref<1x1x128xf32, #tpu.memory_space<vmem>>
    %34 = tpu.memref_squeeze %33 : memref<1x1x128xf32, #tpu.memory_space<vmem>> -> memref<1x128xf32, #tpu.memory_space<vmem>>
    %35 = tpu.memref_slice %arg7[%9, %c2_i32_15] : memref<2x8x!tpu.dma_semaphore, #tpu.memory_space<semaphore_mem>> -> memref<1x1x!tpu.dma_semaphore, #tpu.memory_space<semaphore_mem>>
    %36 = tpu.memref_squeeze %35 : memref<1x1x!tpu.dma_semaphore, #tpu.memory_space<semaphore_mem>> -> memref<!tpu.dma_semaphore, #tpu.memory_space<semaphore_mem>>
    tpu.enqueue_dma source(%32 : memref<1x128xf32, #tpu.memory_space<any>>) target(%34 : memref<1x128xf32, #tpu.memory_space<vmem>>) target_semaphore(%36 : memref<!tpu.dma_semaphore, #tpu.memory_space<semaphore_mem>>)
    %c3_i32 = arith.constant 3 : i32
    %37 = arith.addi %12, %c3_i32 : i32
    %38 = arith.index_cast %37 : i32 to index
    %39 = memref.load %arg2[%38] : memref<16xi32, #tpu.memory_space<smem>>
    %c3_i32_19 = arith.constant 3 : i32
    %c0_i32_20 = arith.constant 0 : i32
    %40 = tpu.memref_slice %arg3[%39, %c0_i32_20] : memref<64x128xf32, #tpu.memory_space<any>> -> memref<1x128xf32, #tpu.memory_space<any>>
    %c3_i32_21 = arith.constant 3 : i32
    %c0_i32_22 = arith.constant 0 : i32
    %41 = tpu.memref_slice %arg6[%9, %c3_i32_21, %c0_i32_22] : memref<2x8x128xf32, #tpu.memory_space<vmem>> -> memref<1x1x128xf32, #tpu.memory_space<vmem>>
    %42 = tpu.memref_squeeze %41 : memref<1x1x128xf32, #tpu.memory_space<vmem>> -> memref<1x128xf32, #tpu.memory_space<vmem>>
    %43 = tpu.memref_slice %arg7[%9, %c3_i32_19] : memref<2x8x!tpu.dma_semaphore, #tpu.memory_space<semaphore_mem>> -> memref<1x1x!tpu.dma_semaphore, #tpu.memory_space<semaphore_mem>>
    %44 = tpu.memref_squeeze %43 : memref<1x1x!tpu.dma_semaphore, #tpu.memory_space<semaphore_mem>> -> memref<!tpu.dma_semaphore, #tpu.memory_space<semaphore_mem>>
    tpu.enqueue_dma source(%40 : memref<1x128xf32, #tpu.memory_space<any>>) target(%42 : memref<1x128xf32, #tpu.memory_space<vmem>>) target_semaphore(%44 : memref<!tpu.dma_semaphore, #tpu.memory_space<semaphore_mem>>)
    %c4_i32 = arith.constant 4 : i32
    %45 = arith.addi %12, %c4_i32 : i32
    %46 = arith.index_cast %45 : i32 to index
    %47 = memref.load %arg2[%46] : memref<16xi32, #tpu.memory_space<smem>>
    %c4_i32_23 = arith.constant 4 : i32
    %c0_i32_24 = arith.constant 0 : i32
    %48 = tpu.memref_slice %arg3[%47, %c0_i32_24] : memref<64x128xf32, #tpu.memory_space<any>> -> memref<1x128xf32, #tpu.memory_space<any>>
    %c4_i32_25 = arith.constant 4 : i32
    %c0_i32_26 = arith.constant 0 : i32
    %49 = tpu.memref_slice %arg6[%9, %c4_i32_25, %c0_i32_26] : memref<2x8x128xf32, #tpu.memory_space<vmem>> -> memref<1x1x128xf32, #tpu.memory_space<vmem>>
    %50 = tpu.memref_squeeze %49 : memref<1x1x128xf32, #tpu.memory_space<vmem>> -> memref<1x128xf32, #tpu.memory_space<vmem>>
    %51 = tpu.memref_slice %arg7[%9, %c4_i32_23] : memref<2x8x!tpu.dma_semaphore, #tpu.memory_space<semaphore_mem>> -> memref<1x1x!tpu.dma_semaphore, #tpu.memory_space<semaphore_mem>>
    %52 = tpu.memref_squeeze %51 : memref<1x1x!tpu.dma_semaphore, #tpu.memory_space<semaphore_mem>> -> memref<!tpu.dma_semaphore, #tpu.memory_space<semaphore_mem>>
    tpu.enqueue_dma source(%48 : memref<1x128xf32, #tpu.memory_space<any>>) target(%50 : memref<1x128xf32, #tpu.memory_space<vmem>>) target_semaphore(%52 : memref<!tpu.dma_semaphore, #tpu.memory_space<semaphore_mem>>)
    %c5_i32 = arith.constant 5 : i32
    %53 = arith.addi %12, %c5_i32 : i32
    %54 = arith.index_cast %53 : i32 to index
    %55 = memref.load %arg2[%54] : memref<16xi32, #tpu.memory_space<smem>>
    %c5_i32_27 = arith.constant 5 : i32
    %c0_i32_28 = arith.constant 0 : i32
    %56 = tpu.memref_slice %arg3[%55, %c0_i32_28] : memref<64x128xf32, #tpu.memory_space<any>> -> memref<1x128xf32, #tpu.memory_space<any>>
    %c5_i32_29 = arith.constant 5 : i32
    %c0_i32_30 = arith.constant 0 : i32
    %57 = tpu.memref_slice %arg6[%9, %c5_i32_29, %c0_i32_30] : memref<2x8x128xf32, #tpu.memory_space<vmem>> -> memref<1x1x128xf32, #tpu.memory_space<vmem>>
    %58 = tpu.memref_squeeze %57 : memref<1x1x128xf32, #tpu.memory_space<vmem>> -> memref<1x128xf32, #tpu.memory_space<vmem>>
    %59 = tpu.memref_slice %arg7[%9, %c5_i32_27] : memref<2x8x!tpu.dma_semaphore, #tpu.memory_space<semaphore_mem>> -> memref<1x1x!tpu.dma_semaphore, #tpu.memory_space<semaphore_mem>>
    %60 = tpu.memref_squeeze %59 : memref<1x1x!tpu.dma_semaphore, #tpu.memory_space<semaphore_mem>> -> memref<!tpu.dma_semaphore, #tpu.memory_space<semaphore_mem>>
    tpu.enqueue_dma source(%56 : memref<1x128xf32, #tpu.memory_space<any>>) target(%58 : memref<1x128xf32, #tpu.memory_space<vmem>>) target_semaphore(%60 : memref<!tpu.dma_semaphore, #tpu.memory_space<semaphore_mem>>)
    %c6_i32 = arith.constant 6 : i32
    %61 = arith.addi %12, %c6_i32 : i32
    %62 = arith.index_cast %61 : i32 to index
    %63 = memref.load %arg2[%62] : memref<16xi32, #tpu.memory_space<smem>>
    %c6_i32_31 = arith.constant 6 : i32
    %c0_i32_32 = arith.constant 0 : i32
    %64 = tpu.memref_slice %arg3[%63, %c0_i32_32] : memref<64x128xf32, #tpu.memory_space<any>> -> memref<1x128xf32, #tpu.memory_space<any>>
    %c6_i32_33 = arith.constant 6 : i32
    %c0_i32_34 = arith.constant 0 : i32
    %65 = tpu.memref_slice %arg6[%9, %c6_i32_33, %c0_i32_34] : memref<2x8x128xf32, #tpu.memory_space<vmem>> -> memref<1x1x128xf32, #tpu.memory_space<vmem>>
    %66 = tpu.memref_squeeze %65 : memref<1x1x128xf32, #tpu.memory_space<vmem>> -> memref<1x128xf32, #tpu.memory_space<vmem>>
    %67 = tpu.memref_slice %arg7[%9, %c6_i32_31] : memref<2x8x!tpu.dma_semaphore, #tpu.memory_space<semaphore_mem>> -> memref<1x1x!tpu.dma_semaphore, #tpu.memory_space<semaphore_mem>>
    %68 = tpu.memref_squeeze %67 : memref<1x1x!tpu.dma_semaphore, #tpu.memory_space<semaphore_mem>> -> memref<!tpu.dma_semaphore, #tpu.memory_space<semaphore_mem>>
    tpu.enqueue_dma source(%64 : memref<1x128xf32, #tpu.memory_space<any>>) target(%66 : memref<1x128xf32, #tpu.memory_space<vmem>>) target_semaphore(%68 : memref<!tpu.dma_semaphore, #tpu.memory_space<semaphore_mem>>)
    %c7_i32 = arith.constant 7 : i32
    %69 = arith.addi %12, %c7_i32 : i32
    %70 = arith.index_cast %69 : i32 to index
    %71 = memref.load %arg2[%70] : memref<16xi32, #tpu.memory_space<smem>>
    %c7_i32_35 = arith.constant 7 : i32
    %c0_i32_36 = arith.constant 0 : i32
    %72 = tpu.memref_slice %arg3[%71, %c0_i32_36] : memref<64x128xf32, #tpu.memory_space<any>> -> memref<1x128xf32, #tpu.memory_space<any>>
    %c7_i32_37 = arith.constant 7 : i32
    %c0_i32_38 = arith.constant 0 : i32
    %73 = tpu.memref_slice %arg6[%9, %c7_i32_37, %c0_i32_38] : memref<2x8x128xf32, #tpu.memory_space<vmem>> -> memref<1x1x128xf32, #tpu.memory_space<vmem>>
    %74 = tpu.memref_squeeze %73 : memref<1x1x128xf32, #tpu.memory_space<vmem>> -> memref<1x128xf32, #tpu.memory_space<vmem>>
    %75 = tpu.memref_slice %arg7[%9, %c7_i32_35] : memref<2x8x!tpu.dma_semaphore, #tpu.memory_space<semaphore_mem>> -> memref<1x1x!tpu.dma_semaphore, #tpu.memory_space<semaphore_mem>>
    %76 = tpu.memref_squeeze %75 : memref<1x1x!tpu.dma_semaphore, #tpu.memory_space<semaphore_mem>> -> memref<!tpu.dma_semaphore, #tpu.memory_space<semaphore_mem>>
    tpu.enqueue_dma source(%72 : memref<1x128xf32, #tpu.memory_space<any>>) target(%74 : memref<1x128xf32, #tpu.memory_space<vmem>>) target_semaphore(%76 : memref<!tpu.dma_semaphore, #tpu.memory_space<semaphore_mem>>)
    %c0_i32_39 = arith.constant 0 : i32
    %c0_i32_40 = arith.constant 0 : i32
    %c0_i32_41 = arith.constant 0 : i32
    %c0_i32_42 = arith.constant 0 : i32
    %77 = tpu.memref_slice %arg3[%c0_i32_41, %c0_i32_42] : memref<64x128xf32, #tpu.memory_space<any>> -> memref<1x128xf32, #tpu.memory_space<any>>
    %c0_i32_43 = arith.constant 0 : i32
    %c0_i32_44 = arith.constant 0 : i32
    %78 = tpu.memref_slice %arg6[%c0_i32_39, %c0_i32_43, %c0_i32_44] : memref<2x8x128xf32, #tpu.memory_space<vmem>> -> memref<1x1x128xf32, #tpu.memory_space<vmem>>
    %79 = tpu.memref_squeeze %78 : memref<1x1x128xf32, #tpu.memory_space<vmem>> -> memref<1x128xf32, #tpu.memory_space<vmem>>
    %80 = tpu.memref_slice %arg7[%9, %c0_i32_40] : memref<2x8x!tpu.dma_semaphore, #tpu.memory_space<semaphore_mem>> -> memref<1x1x!tpu.dma_semaphore, #tpu.memory_space<semaphore_mem>>
    %81 = tpu.memref_squeeze %80 : memref<1x1x!tpu.dma_semaphore, #tpu.memory_space<semaphore_mem>> -> memref<!tpu.dma_semaphore, #tpu.memory_space<semaphore_mem>>
    tpu.wait_dma2 semaphore(%81 : memref<!tpu.dma_semaphore, #tpu.memory_space<semaphore_mem>>) src(%77 : memref<1x128xf32, #tpu.memory_space<any>>) dst(%79 : memref<1x128xf32, #tpu.memory_space<vmem>>)
    %c0_i32_45 = arith.constant 0 : i32
    %c1_i32_46 = arith.constant 1 : i32
    %c0_i32_47 = arith.constant 0 : i32
    %c0_i32_48 = arith.constant 0 : i32
    %82 = tpu.memref_slice %arg3[%c0_i32_47, %c0_i32_48] : memref<64x128xf32, #tpu.memory_space<any>> -> memref<1x128xf32, #tpu.memory_space<any>>
    %c0_i32_49 = arith.constant 0 : i32
    %c0_i32_50 = arith.constant 0 : i32
    %83 = tpu.memref_slice %arg6[%c0_i32_45, %c0_i32_49, %c0_i32_50] : memref<2x8x128xf32, #tpu.memory_space<vmem>> -> memref<1x1x128xf32, #tpu.memory_space<vmem>>
    %84 = tpu.memref_squeeze %83 : memref<1x1x128xf32, #tpu.memory_space<vmem>> -> memref<1x128xf32, #tpu.memory_space<vmem>>
    %85 = tpu.memref_slice %arg7[%9, %c1_i32_46] : memref<2x8x!tpu.dma_semaphore, #tpu.memory_space<semaphore_mem>> -> memref<1x1x!tpu.dma_semaphore, #tpu.memory_space<semaphore_mem>>
    %86 = tpu.memref_squeeze %85 : memref<1x1x!tpu.dma_semaphore, #tpu.memory_space<semaphore_mem>> -> memref<!tpu.dma_semaphore, #tpu.memory_space<semaphore_mem>>
    tpu.wait_dma2 semaphore(%86 : memref<!tpu.dma_semaphore, #tpu.memory_space<semaphore_mem>>) src(%82 : memref<1x128xf32, #tpu.memory_space<any>>) dst(%84 : memref<1x128xf32, #tpu.memory_space<vmem>>)
    %c0_i32_51 = arith.constant 0 : i32
    %c2_i32_52 = arith.constant 2 : i32
    %c0_i32_53 = arith.constant 0 : i32
    %c0_i32_54 = arith.constant 0 : i32
    %87 = tpu.memref_slice %arg3[%c0_i32_53, %c0_i32_54] : memref<64x128xf32, #tpu.memory_space<any>> -> memref<1x128xf32, #tpu.memory_space<any>>
    %c0_i32_55 = arith.constant 0 : i32
    %c0_i32_56 = arith.constant 0 : i32
    %88 = tpu.memref_slice %arg6[%c0_i32_51, %c0_i32_55, %c0_i32_56] : memref<2x8x128xf32, #tpu.memory_space<vmem>> -> memref<1x1x128xf32, #tpu.memory_space<vmem>>
    %89 = tpu.memref_squeeze %88 : memref<1x1x128xf32, #tpu.memory_space<vmem>> -> memref<1x128xf32, #tpu.memory_space<vmem>>
    %90 = tpu.memref_slice %arg7[%9, %c2_i32_52] : memref<2x8x!tpu.dma_semaphore, #tpu.memory_space<semaphore_mem>> -> memref<1x1x!tpu.dma_semaphore, #tpu.memory_space<semaphore_mem>>
    %91 = tpu.memref_squeeze %90 : memref<1x1x!tpu.dma_semaphore, #tpu.memory_space<semaphore_mem>> -> memref<!tpu.dma_semaphore, #tpu.memory_space<semaphore_mem>>
    tpu.wait_dma2 semaphore(%91 : memref<!tpu.dma_semaphore, #tpu.memory_space<semaphore_mem>>) src(%87 : memref<1x128xf32, #tpu.memory_space<any>>) dst(%89 : memref<1x128xf32, #tpu.memory_space<vmem>>)
    %c0_i32_57 = arith.constant 0 : i32
    %c3_i32_58 = arith.constant 3 : i32
    %c0_i32_59 = arith.constant 0 : i32
    %c0_i32_60 = arith.constant 0 : i32
    %92 = tpu.memref_slice %arg3[%c0_i32_59, %c0_i32_60] : memref<64x128xf32, #tpu.memory_space<any>> -> memref<1x128xf32, #tpu.memory_space<any>>
    %c0_i32_61 = arith.constant 0 : i32
    %c0_i32_62 = arith.constant 0 : i32
    %93 = tpu.memref_slice %arg6[%c0_i32_57, %c0_i32_61, %c0_i32_62] : memref<2x8x128xf32, #tpu.memory_space<vmem>> -> memref<1x1x128xf32, #tpu.memory_space<vmem>>
    %94 = tpu.memref_squeeze %93 : memref<1x1x128xf32, #tpu.memory_space<vmem>> -> memref<1x128xf32, #tpu.memory_space<vmem>>
    %95 = tpu.memref_slice %arg7[%9, %c3_i32_58] : memref<2x8x!tpu.dma_semaphore, #tpu.memory_space<semaphore_mem>> -> memref<1x1x!tpu.dma_semaphore, #tpu.memory_space<semaphore_mem>>
    %96 = tpu.memref_squeeze %95 : memref<1x1x!tpu.dma_semaphore, #tpu.memory_space<semaphore_mem>> -> memref<!tpu.dma_semaphore, #tpu.memory_space<semaphore_mem>>
    tpu.wait_dma2 semaphore(%96 : memref<!tpu.dma_semaphore, #tpu.memory_space<semaphore_mem>>) src(%92 : memref<1x128xf32, #tpu.memory_space<any>>) dst(%94 : memref<1x128xf32, #tpu.memory_space<vmem>>)
    %c0_i32_63 = arith.constant 0 : i32
    %c4_i32_64 = arith.constant 4 : i32
    %c0_i32_65 = arith.constant 0 : i32
    %c0_i32_66 = arith.constant 0 : i32
    %97 = tpu.memref_slice %arg3[%c0_i32_65, %c0_i32_66] : memref<64x128xf32, #tpu.memory_space<any>> -> memref<1x128xf32, #tpu.memory_space<any>>
    %c0_i32_67 = arith.constant 0 : i32
    %c0_i32_68 = arith.constant 0 : i32
    %98 = tpu.memref_slice %arg6[%c0_i32_63, %c0_i32_67, %c0_i32_68] : memref<2x8x128xf32, #tpu.memory_space<vmem>> -> memref<1x1x128xf32, #tpu.memory_space<vmem>>
    %99 = tpu.memref_squeeze %98 : memref<1x1x128xf32, #tpu.memory_space<vmem>> -> memref<1x128xf32, #tpu.memory_space<vmem>>
    %100 = tpu.memref_slice %arg7[%9, %c4_i32_64] : memref<2x8x!tpu.dma_semaphore, #tpu.memory_space<semaphore_mem>> -> memref<1x1x!tpu.dma_semaphore, #tpu.memory_space<semaphore_mem>>
    %101 = tpu.memref_squeeze %100 : memref<1x1x!tpu.dma_semaphore, #tpu.memory_space<semaphore_mem>> -> memref<!tpu.dma_semaphore, #tpu.memory_space<semaphore_mem>>
    tpu.wait_dma2 semaphore(%101 : memref<!tpu.dma_semaphore, #tpu.memory_space<semaphore_mem>>) src(%97 : memref<1x128xf32, #tpu.memory_space<any>>) dst(%99 : memref<1x128xf32, #tpu.memory_space<vmem>>)
    %c0_i32_69 = arith.constant 0 : i32
    %c5_i32_70 = arith.constant 5 : i32
    %c0_i32_71 = arith.constant 0 : i32
    %c0_i32_72 = arith.constant 0 : i32
    %102 = tpu.memref_slice %arg3[%c0_i32_71, %c0_i32_72] : memref<64x128xf32, #tpu.memory_space<any>> -> memref<1x128xf32, #tpu.memory_space<any>>
    %c0_i32_73 = arith.constant 0 : i32
    %c0_i32_74 = arith.constant 0 : i32
    %103 = tpu.memref_slice %arg6[%c0_i32_69, %c0_i32_73, %c0_i32_74] : memref<2x8x128xf32, #tpu.memory_space<vmem>> -> memref<1x1x128xf32, #tpu.memory_space<vmem>>
    %104 = tpu.memref_squeeze %103 : memref<1x1x128xf32, #tpu.memory_space<vmem>> -> memref<1x128xf32, #tpu.memory_space<vmem>>
    %105 = tpu.memref_slice %arg7[%9, %c5_i32_70] : memref<2x8x!tpu.dma_semaphore, #tpu.memory_space<semaphore_mem>> -> memref<1x1x!tpu.dma_semaphore, #tpu.memory_space<semaphore_mem>>
    %106 = tpu.memref_squeeze %105 : memref<1x1x!tpu.dma_semaphore, #tpu.memory_space<semaphore_mem>> -> memref<!tpu.dma_semaphore, #tpu.memory_space<semaphore_mem>>
    tpu.wait_dma2 semaphore(%106 : memref<!tpu.dma_semaphore, #tpu.memory_space<semaphore_mem>>) src(%102 : memref<1x128xf32, #tpu.memory_space<any>>) dst(%104 : memref<1x128xf32, #tpu.memory_space<vmem>>)
    %c0_i32_75 = arith.constant 0 : i32
    %c6_i32_76 = arith.constant 6 : i32
    %c0_i32_77 = arith.constant 0 : i32
    %c0_i32_78 = arith.constant 0 : i32
    %107 = tpu.memref_slice %arg3[%c0_i32_77, %c0_i32_78] : memref<64x128xf32, #tpu.memory_space<any>> -> memref<1x128xf32, #tpu.memory_space<any>>
    %c0_i32_79 = arith.constant 0 : i32
    %c0_i32_80 = arith.constant 0 : i32
    %108 = tpu.memref_slice %arg6[%c0_i32_75, %c0_i32_79, %c0_i32_80] : memref<2x8x128xf32, #tpu.memory_space<vmem>> -> memref<1x1x128xf32, #tpu.memory_space<vmem>>
    %109 = tpu.memref_squeeze %108 : memref<1x1x128xf32, #tpu.memory_space<vmem>> -> memref<1x128xf32, #tpu.memory_space<vmem>>
    %110 = tpu.memref_slice %arg7[%9, %c6_i32_76] : memref<2x8x!tpu.dma_semaphore, #tpu.memory_space<semaphore_mem>> -> memref<1x1x!tpu.dma_semaphore, #tpu.memory_space<semaphore_mem>>
    %111 = tpu.memref_squeeze %110 : memref<1x1x!tpu.dma_semaphore, #tpu.memory_space<semaphore_mem>> -> memref<!tpu.dma_semaphore, #tpu.memory_space<semaphore_mem>>
    tpu.wait_dma2 semaphore(%111 : memref<!tpu.dma_semaphore, #tpu.memory_space<semaphore_mem>>) src(%107 : memref<1x128xf32, #tpu.memory_space<any>>) dst(%109 : memref<1x128xf32, #tpu.memory_space<vmem>>)
    %c0_i32_81 = arith.constant 0 : i32
    %c7_i32_82 = arith.constant 7 : i32
    %c0_i32_83 = arith.constant 0 : i32
    %c0_i32_84 = arith.constant 0 : i32
    %112 = tpu.memref_slice %arg3[%c0_i32_83, %c0_i32_84] : memref<64x128xf32, #tpu.memory_space<any>> -> memref<1x128xf32, #tpu.memory_space<any>>
    %c0_i32_85 = arith.constant 0 : i32
    %c0_i32_86 = arith.constant 0 : i32
    %113 = tpu.memref_slice %arg6[%c0_i32_81, %c0_i32_85, %c0_i32_86] : memref<2x8x128xf32, #tpu.memory_space<vmem>> -> memref<1x1x128xf32, #tpu.memory_space<vmem>>
    %114 = tpu.memref_squeeze %113 : memref<1x1x128xf32, #tpu.memory_space<vmem>> -> memref<1x128xf32, #tpu.memory_space<vmem>>
    %115 = tpu.memref_slice %arg7[%9, %c7_i32_82] : memref<2x8x!tpu.dma_semaphore, #tpu.memory_space<semaphore_mem>> -> memref<1x1x!tpu.dma_semaphore, #tpu.memory_space<semaphore_mem>>
    %116 = tpu.memref_squeeze %115 : memref<1x1x!tpu.dma_semaphore, #tpu.memory_space<semaphore_mem>> -> memref<!tpu.dma_semaphore, #tpu.memory_space<semaphore_mem>>
    tpu.wait_dma2 semaphore(%116 : memref<!tpu.dma_semaphore, #tpu.memory_space<semaphore_mem>>) src(%112 : memref<1x128xf32, #tpu.memory_space<any>>) dst(%114 : memref<1x128xf32, #tpu.memory_space<vmem>>)
    %117 = arith.index_cast %10 : i32 to index
    %c0 = arith.constant 0 : index
    %118 = vector.load %arg4[%117, %c0] : memref<8x128xf32, #tpu.memory_space<vmem>>, vector<8x128xf32>
    %119 = arith.index_cast %9 : i32 to index
    %c0_87 = arith.constant 0 : index
    %c0_88 = arith.constant 0 : index
    %120 = vector.load %arg6[%119, %c0_87, %c0_88] : memref<2x8x128xf32, #tpu.memory_space<vmem>>, vector<1x8x128xf32>
    %121 = vector.shape_cast %120 : vector<1x8x128xf32> to vector<8x128xf32>
    %122 = arith.addf %121, %118 : vector<8x128xf32>
    %123 = vector.shape_cast %122 : vector<8x128xf32> to vector<1x8x128xf32>
    %c0_89 = arith.constant 0 : index
    %c0_90 = arith.constant 0 : index
    %c0_91 = arith.constant 0 : index
    %124 = vector.load %arg5[%c0_89, %c0_90, %c0_91] : memref<1x8x128xf32, #tpu.memory_space<vmem>>, vector<1x8x128xf32>
    tpu.vector_store %arg5[%c0_89, %c0_90, %c0_91], %123 {strides = array<i32>} : memref<1x8x128xf32, #tpu.memory_space<vmem>>, vector<1x8x128xf32>,
    return
  }
  func.func @transform_1(%arg0: i32, %arg1: i32, %arg2: memref<16xi32, #tpu.memory_space<smem>>) -> (i32, i32) {
    %c0_i32 = arith.constant 0 : i32
    %c0_i32_0 = arith.constant 0 : i32
    %c0_i32_1 = arith.constant 0 : i32
    return %c0_i32, %c0_i32_0 : i32, i32
  }
  func.func @transform_2(%arg0: i32, %arg1: i32, %arg2: memref<16xi32, #tpu.memory_space<smem>>) -> (i32, i32, i32) {
    %c0_i32 = arith.constant 0 : i32
    %c0_i32_0 = arith.constant 0 : i32
    return %arg0, %arg1, %c0_i32 : i32, i32, i32
  }
}

</mosaic_0001>

<llo_original>
// kernel: tpu_custom_call.1
$region0: #{tpu_custom_call.1}
  #allocation0 [shape = 'u32[]', space=smem, size = 0x4, offset = 0x4, fixed_abs, tag = 'smem constant byte address 0x4 - core index']
  #allocation1 [shape = 'u32[72,128]{1,0:T(1,128)}', space=vmem, size = 0x9000, scoped, tag = 'internal scratch']
  #allocation2 [shape = 'f32[2,8,128]{2,1,0:T(8,128)}', space=vmem, size = 0x2000, scoped, tag = 'scratch operand']
  #allocation3 [shape = 's32[16]{0}', space=sflag, size = 0x40, scoped, tag = 'scratch operand']
  #allocation4 [shape = 's32[1]{0}', space=sflag, size = 0x4, scoped, tag = 'scoped memory for tpu_custom_call.1']
  #allocation5 [shape = 'u8[512]{0}', space=smem, size = 0x200, scoped, tag = 'prefetched SMEM operand 0']
  #allocation10 [shape = 's32[]', space=sflag, size = 0x4, offset = 0, fixed_abs, tag = 'sflag constant byte address 0x0 - dummy sync flag']
  #allocation11 [shape = 's32[]', space=sflag, size = 0x4, offset = 0, fixed_abs, tag = 'sflag constant byte address 0x0 - dummy sync flag']
  #allocation12 [shape = 'u32[]', space=smem, size = 0x4, offset = 0x44, fixed_abs, tag = 'smem constant byte address 0x44 - assertion arg 0']
  #allocation13 [shape = 'u32[]', space=smem, size = 0x4, offset = 0x48, fixed_abs, tag = 'smem constant byte address 0x48 - assertion arg 1']
  #allocation14 [shape = 's32[]', space=sflag, size = 0x4, offset = 0, fixed_abs, tag = 'sflag constant byte address 0x0 - dummy sync flag']
  #allocation15 [shape = 's32[]', space=sflag, size = 0x4, offset = 0, fixed_abs, tag = 'sflag constant byte address 0x0 - dummy sync flag']
  #allocation16 [shape = 's32[]', space=sflag, size = 0x4, offset = 0, fixed_abs, tag = 'sflag constant byte address 0x0 - dummy sync flag']
  #allocation17 [shape = 's32[]', space=sflag, size = 0x4, offset = 0, fixed_abs, tag = 'sflag constant byte address 0x0 - dummy sync flag']
  #allocation18 [shape = 's32[]', space=sflag, size = 0x4, offset = 0, fixed_abs, tag = 'sflag constant byte address 0x0 - dummy sync flag']
  #allocation19 [shape = 's32[]', space=sflag, size = 0x4, offset = 0, fixed_abs, tag = 'sflag constant byte address 0x0 - dummy sync flag']
  #allocation20 [shape = 's32[]', space=sflag, size = 0x4, offset = 0, fixed_abs, tag = 'sflag constant byte address 0x0 - dummy sync flag']
  #allocation21 [shape = 's32[]', space=sflag, size = 0x4, offset = 0, fixed_abs, tag = 'sflag constant byte address 0x0 - dummy sync flag']
  #allocation22 [shape = 's32[]', space=sflag, size = 0x4, offset = 0, fixed_abs, tag = 'sflag constant byte address 0x0 - dummy sync flag']
  #allocation23 [shape = 's32[]', space=sflag, size = 0x4, offset = 0, fixed_abs, tag = 'sflag constant byte address 0x0 - dummy sync flag']
  #allocation24 [shape = 's32[]', space=sflag, size = 0x4, offset = 0, fixed_abs, tag = 'sflag constant byte address 0x0 - dummy sync flag']
  #allocation25 [shape = 's32[]', space=sflag, size = 0x4, offset = 0, fixed_abs, tag = 'sflag constant byte address 0x0 - dummy sync flag']
  #allocation26 [shape = 's32[]', space=sflag, size = 0x4, offset = 0, fixed_abs, tag = 'sflag constant byte address 0x0 - dummy sync flag']
  #allocation27 [shape = 's32[]', space=sflag, size = 0x4, offset = 0, fixed_abs, tag = 'sflag constant byte address 0x0 - dummy sync flag']
  %s0 = inlined_call_operand.hbm [shape: s32[16], index: 0, kind: input, shape index: {}]
  %s1 = inlined_call_operand.hbm [shape: f32[64,128], index: 1, kind: input, shape index: {}]
  %s2 = inlined_call_operand.hbm [shape: f32[8,128], index: 2, kind: input, shape index: {}]
  %s3 = inlined_call_operand.hbm [shape: f32[2,8,128], index: 3, kind: output, shape index: {}]
  %s4 = sld [smem:[#allocation0]]
  $region73: #{tpu_custom_call.1} parent=0
    _
  %s6 = ssub.s32 1, %s4
  %s7 = scalar_select 0, %s6, %s4
  %s9 = sshll.u32 %s0, 4
  %s10 = int_to_ptr.hbm [resolvable:$true] %s9
  %12 = dma.hbm_to_smem %s10, 16, [#allocation5], [#allocation4]
  %14 = dma.done [#allocation4], 16
  %15 = sfence
  $region1: #{tpu_custom_call.1} parent=0
    #allocation6 [shape = 'u8[4096]{0}', space=vmem, size = 0x1000, scoped, tag = 'input window, operand 2, single buffered']
    #allocation7 [shape = 's32[2]{0}', space=sflag, size = 0x8, scoped, tag = 'scoped memory for tpu_custom_call.1']
    #allocation8 [shape = 's32[2]{0}', space=sflag, size = 0x8, scoped, tag = 'scoped memory for tpu_custom_call.1']
    #allocation9 [shape = 'u8[8192]{0}', space=vmem, size = 0x2000, scoped, tag = 'output window, operand 0']
    %16 = vsyncpa [#allocation7], 0
    %17 = vsyncpa [#allocation8], 0
    %s18 = scalar_lea.sflag [#allocation8], 1
    %19 = vsyncpa %s18, 0
    loop: start=0, step=1, limit=4
    $region2: #{tpu_custom_call.1} parent=1 // loop_pre_header
      _
    $region3: #{tpu_custom_call.1} parent=1 // loop_header
      %s21 = sphi 0, %s25
      %p22 = scmp.ge.s32.totalorder %s21, 4
      %s28 = sphi 0, %s40
      %s29 = sphi 0, %s36
      %s30 = sphi 0, %s28
      %s31 = sphi 0, %s29
      %s32 = sphi 0, %s30
      %s33 = sphi 0, %s31
      %s41 = sphi 0, %s41
      %s43 = sphi 0, %s41
      %s44 = sphi 0, %s43
      %s58 = sphi 0, %s44
      %s66 = sphi 0, %s68
      %s69 = sphi 0, %s66
      %s70 = sphi 0, %s69
      %s86 = sphi 0, %s70
    $region4: #{tpu_custom_call.1} parent=1 // loop_header_branch
      %24 = sbr.rel (%p22) target = $region8
    $region5: #{tpu_custom_call.1} parent=1 // loop_body
      %s26 = ssub.s32 %s21, 1
      %s27 = ssub.s32 %s21, 2
      %s34 = sadd.s32 1, %s29
      %p35 = scmp.ge.s32.totalorder %s34, 1
      %s36 = scalar_select %p35, 0, %s34
      %s37 = sadd.s32 1, %s28
      %s38 = scalar_select %p35, %s37, %s28
      %p39 = scmp.ge.s32.totalorder %s38, 2
      %s40 = scalar_select %p39, 0, %s38
      %s42 = sadd.s32 %s41, 1
      %p45 = scmp.eq.s32.totalorder %s21, 1
      %p46 = scmp.ne.s32.totalorder %s41, %s43
      %p47 = scmp.eq.s32.totalorder %s21, 0
      %p48 = por %p46, %p47
      %p49 = scmp.ne.s32.totalorder %s41, %s43
      %p50 = scmp.eq.s32.totalorder %s26, 1
      %p51 = por %p49, %p50
      %p52 = scmp.ne.s32.totalorder %s43, %s44
      %p53 = scmp.eq.s32.totalorder %s26, 0
      %p54 = por %p52, %p53
      %p55 = scmp.ne.s32.totalorder %s43, %s44
      %p56 = scmp.eq.s32.totalorder %s27, 1
      %p57 = por %p55, %p56
      %p59 = scmp.ne.s32.totalorder %s44, %s58
      %p60 = scmp.eq.s32.totalorder %s27, 0
      %p61 = por %p59, %p60
      %s62 = ssub.s32 %s28, %s40
      %s63 = ssub.s32 %s29, %s36
      %s64 = sor.u32 %s62, %s63
      %p65 = scmp.eq.s32.totalorder %s64, 0
      %s67 = sadd.s32 %s66, 1
      %s68 = scalar_select %p65, %s66, %s67
      %p71 = pneg %p65
      %p72 = scmp.eq.s32.totalorder %s21, 1
      %p73 = por %p71, %p72
      %p74 = scmp.ne.s32.totalorder %s66, %s69
      %p75 = scmp.eq.s32.totalorder %s21, 0
      %p76 = por %p74, %p75
      %p77 = scmp.ne.s32.totalorder %s66, %s69
      %p78 = scmp.eq.s32.totalorder %s26, 1
      %p79 = por %p77, %p78
      %p80 = scmp.ne.s32.totalorder %s69, %s70
      %p81 = scmp.eq.s32.totalorder %s26, 0
      %p82 = por %p80, %p81
      %p83 = scmp.ne.s32.totalorder %s69, %s70
      %p84 = scmp.eq.s32.totalorder %s27, 1
      %p85 = por %p83, %p84
      %p87 = scmp.ne.s32.totalorder %s70, %s86
      %p88 = scmp.eq.s32.totalorder %s27, 0
      %p89 = por %p87, %p88
      %p90 = scmp.le.s32.totalorder 1, %s21
      %p91 = scmp.lt.s32.totalorder %s21, 3
      %p92 = pnand %p90, %p91
      %p93 = pneg %p92
      // Predicated region
      $region9: #{tpu_custom_call.1} parent=5 // pred_check
        _
      $region10: #{tpu_custom_call.1} parent=5 // pred_check_branch
        %95 = sbr.rel (%p92) target = $region12
      $region11: #{tpu_custom_call.1} parent=5 // pred_region
        %s96 = ssub.s32 %s21, 1
        // Predicated region
        $region13: #{tpu_custom_call.1} parent=11 // pred_check
          %p97 = pneg %p54
        $region14: #{tpu_custom_call.1} parent=11 // pred_check_branch
          %99 = sbr.rel (%p97) target = $region16
        $region15: #{tpu_custom_call.1} parent=11 // pred_region
          %101 = vsyncadd [#allocation7], 0
          %s103 = sshll.u32 %s2, 4
          %s104 = int_to_ptr.hbm [resolvable:$true] %s103
          %s105 = sshll.u32 [#allocation6], 4
          %s106 = int_to_ptr.vmem [resolvable:$true] %s105
          %108 = dma.hbm_to_vmem [thread:$0]  %s104, 128, %s106, [#allocation7]
        $region16: #{tpu_custom_call.1} parent=11 // pred_fallthru
          _
      $region12: #{tpu_custom_call.1} parent=5 // pred_fallthru
        _
      %p109 = scmp.lt.s32.totalorder %s21, 2
      // Predicated region
      $region17: #{tpu_custom_call.1} parent=5 // pred_check
        %p110 = pneg %p109
      $region18: #{tpu_custom_call.1} parent=5 // pred_check_branch
        %112 = sbr.rel (%p110) target = $region20
      $region19: #{tpu_custom_call.1} parent=5 // pred_region
        _
      $region20: #{tpu_custom_call.1} parent=5 // pred_fallthru
        _
      %p113 = scmp.le.s32.totalorder 1, %s21
      %p114 = scmp.lt.s32.totalorder %s21, 3
      %p115 = pnand %p113, %p114
      %p116 = pneg %p115
      // Predicated region
      $region21: #{tpu_custom_call.1} parent=5 // pred_check
        _
      $region22: #{tpu_custom_call.1} parent=5 // pred_check_branch
        %118 = sbr.rel (%p115) target = $region24
      $region23: #{tpu_custom_call.1} parent=5 // pred_region
        %s119 = ssub.s32 %s21, 1
        // Predicated region
        $region25: #{tpu_custom_call.1} parent=23 // pred_check
          %p120 = pneg %p54
        $region26: #{tpu_custom_call.1} parent=23 // pred_check_branch
          %122 = sbr.rel (%p120) target = $region28
        $region27: #{tpu_custom_call.1} parent=23 // pred_region
          %124 = dma.done [#allocation7], 128
        $region28: #{tpu_custom_call.1} parent=23 // pred_fallthru
          _
        %p125 = pneg %p54
        %p126 = pneg %p51
        %p127 = pneg %p82
        %p128 = pneg %p79
        %s129 = sand.u32 %s69, 1
        %s130 = scalar_lea.sflag [#allocation8], %s129
        %s131 = sand.u32 %s69, 1
        %s132 = smul.addr %s131, 8
        %s133 = scalar_lea.vmem [#allocation9], %s132
        %p134 = scmp.lt.s32.totalorder %s31, 0
        %s135 = ssub.s32 0, %s31
        %s136 = scalar_select %p134, %s135, %s31
        %s137 = sand.u32 %s136, 1
        %s138 = ssub.s32 0, %s137
        %s139 = scalar_select %p134, %s138, %s137
        %p140 = scmp.ne.s32.totalorder %s139, 0
        %p141 = scmp.lt.s32.totalorder %s139, 0
        %p142 = pnand %p141, %p140
        %p143 = pneg %p142
        %s144 = sadd.s32 %s139, 2
        %s145 = scalar_select %p143, %s144, %s139
        %s146 = smul.u32 %s31, 8
        %s147 = smul.u32 %s30, 8
        %s148 = sadd.s32 %s147, %s146
        %s149 = sld [smem:[#allocation5 + %s148]]
        %s150 = scalar_lea.hbm %s1, %s149
        %s151 = smul.u32 %s145, 8
        %s152 = scalar_lea.vmem [#allocation2], %s151
        %s153 = scalar_lea.sflag [#allocation3], %s151
        // Predicated region
        $region29: #{tpu_custom_call.1} parent=23 // pred_check
          _
        $region30: #{tpu_custom_call.1} parent=23 // pred_check_branch
          %155 = sbr.rel target = $region32
        $region31: #{tpu_custom_call.1} parent=23 // pred_region
          %156 = sst [smem:[#allocation12]] [#allocation11]
          %157 = sst [smem:[#allocation13]] [#allocation10]
        $region32: #{tpu_custom_call.1} parent=23 // pred_fallthru
          _
        %159 = shalt.err (0)
        %s161 = sshll.u32 %s150, 4
        %s162 = int_to_ptr.hbm [resolvable:$true] %s161
        %s163 = sshll.u32 %s152, 4
        %s164 = int_to_ptr.vmem [resolvable:$true] %s163
        %166 = dma.hbm_to_vmem [thread:$0]  %s162, 16, %s164, %s153
        %s167 = sadd.s32 %s148, 1
        %s168 = sld [smem:[#allocation5 + %s167]]
        %s169 = scalar_lea.hbm %s1, %s168
        %s170 = sadd.s32 1, %s151
        %s171 = scalar_lea.vmem [#allocation2], %s170
        %s172 = scalar_lea.sflag [#allocation3], %s170
        // Predicated region
        $region33: #{tpu_custom_call.1} parent=23 // pred_check
          _
        $region34: #{tpu_custom_call.1} parent=23 // pred_check_branch
          %174 = sbr.rel target = $region36
        $region35: #{tpu_custom_call.1} parent=23 // pred_region
          %175 = sst [smem:[#allocation12]] [#allocation15]
          %176 = sst [smem:[#allocation13]] [#allocation14]
        $region36: #{tpu_custom_call.1} parent=23 // pred_fallthru
          _
        %178 = shalt.err (0)
        %s180 = sshll.u32 %s169, 4
        %s181 = int_to_ptr.hbm [resolvable:$true] %s180
        %s182 = sshll.u32 %s171, 4
        %s183 = int_to_ptr.vmem [resolvable:$true] %s182
        %185 = dma.hbm_to_vmem [thread:$0]  %s181, 16, %s183, %s172
        %s186 = sadd.s32 %s148, 2
        %s187 = sld [smem:[#allocation5 + %s186]]
        %s188 = scalar_lea.hbm %s1, %s187
        %s189 = sadd.s32 2, %s151
        %s190 = scalar_lea.vmem [#allocation2], %s189
        %s191 = scalar_lea.sflag [#allocation3], %s189
        // Predicated region
        $region37: #{tpu_custom_call.1} parent=23 // pred_check
          _
        $region38: #{tpu_custom_call.1} parent=23 // pred_check_branch
          %193 = sbr.rel target = $region40
        $region39: #{tpu_custom_call.1} parent=23 // pred_region
          %194 = sst [smem:[#allocation12]] [#allocation17]
          %195 = sst [smem:[#allocation13]] [#allocation16]
        $region40: #{tpu_custom_call.1} parent=23 // pred_fallthru
          _
        %197 = shalt.err (0)
        %s199 = sshll.u32 %s188, 4
        %s200 = int_to_ptr.hbm [resolvable:$true] %s199
        %s201 = sshll.u32 %s190, 4
        %s202 = int_to_ptr.vmem [resolvable:$true] %s201
        %204 = dma.hbm_to_vmem [thread:$0]  %s200, 16, %s202, %s191
        %s205 = sadd.s32 %s148, 3
        %s206 = sld [smem:[#allocation5 + %s205]]
        %s207 = scalar_lea.hbm %s1, %s206
        %s208 = sadd.s32 3, %s151
        %s209 = scalar_lea.vmem [#allocation2], %s208
        %s210 = scalar_lea.sflag [#allocation3], %s208
        // Predicated region
        $region41: #{tpu_custom_call.1} parent=23 // pred_check
          _
        $region42: #{tpu_custom_call.1} parent=23 // pred_check_branch
          %212 = sbr.rel target = $region44
        $region43: #{tpu_custom_call.1} parent=23 // pred_region
          %213 = sst [smem:[#allocation12]] [#allocation19]
          %214 = sst [smem:[#allocation13]] [#allocation18]
        $region44: #{tpu_custom_call.1} parent=23 // pred_fallthru
          _
        %216 = shalt.err (0)
        %s218 = sshll.u32 %s207, 4
        %s219 = int_to_ptr.hbm [resolvable:$true] %s218
        %s220 = sshll.u32 %s209, 4
        %s221 = int_to_ptr.vmem [resolvable:$true] %s220
        %223 = dma.hbm_to_vmem [thread:$0]  %s219, 16, %s221, %s210
        %s224 = sadd.s32 %s148, 4
        %s225 = sld [smem:[#allocation5 + %s224]]
        %s226 = scalar_lea.hbm %s1, %s225
        %s227 = sadd.s32 4, %s151
        %s228 = scalar_lea.vmem [#allocation2], %s227
        %s229 = scalar_lea.sflag [#allocation3], %s227
        // Predicated region
        $region45: #{tpu_custom_call.1} parent=23 // pred_check
          _
        $region46: #{tpu_custom_call.1} parent=23 // pred_check_branch
          %231 = sbr.rel target = $region48
        $region47: #{tpu_custom_call.1} parent=23 // pred_region
          %232 = sst [smem:[#allocation12]] [#allocation21]
          %233 = sst [smem:[#allocation13]] [#allocation20]
        $region48: #{tpu_custom_call.1} parent=23 // pred_fallthru
          _
        %235 = shalt.err (0)
        %s237 = sshll.u32 %s226, 4
        %s238 = int_to_ptr.hbm [resolvable:$true] %s237
        %s239 = sshll.u32 %s228, 4
        %s240 = int_to_ptr.vmem [resolvable:$true] %s239
        %242 = dma.hbm_to_vmem [thread:$0]  %s238, 16, %s240, %s229
        %s243 = sadd.s32 %s148, 5
        %s244 = sld [smem:[#allocation5 + %s243]]
        %s245 = scalar_lea.hbm %s1, %s244
        %s246 = sadd.s32 5, %s151
        %s247 = scalar_lea.vmem [#allocation2], %s246
        %s248 = scalar_lea.sflag [#allocation3], %s246
        // Predicated region
        $region49: #{tpu_custom_call.1} parent=23 // pred_check
          _
        $region50: #{tpu_custom_call.1} parent=23 // pred_check_branch
          %250 = sbr.rel target = $region52
        $region51: #{tpu_custom_call.1} parent=23 // pred_region
          %251 = sst [smem:[#allocation12]] [#allocation23]
          %252 = sst [smem:[#allocation13]] [#allocation22]
        $region52: #{tpu_custom_call.1} parent=23 // pred_fallthru
          _
        %254 = shalt.err (0)
        %s256 = sshll.u32 %s245, 4
        %s257 = int_to_ptr.hbm [resolvable:$true] %s256
        %s258 = sshll.u32 %s247, 4
        %s259 = int_to_ptr.vmem [resolvable:$true] %s258
        %261 = dma.hbm_to_vmem [thread:$0]  %s257, 16, %s259, %s248
        %s262 = sadd.s32 %s148, 6
        %s263 = sld [smem:[#allocation5 + %s262]]
        %s264 = scalar_lea.hbm %s1, %s263
        %s265 = sadd.s32 6, %s151
        %s266 = scalar_lea.vmem [#allocation2], %s265
        %s267 = scalar_lea.sflag [#allocation3], %s265
        // Predicated region
        $region53: #{tpu_custom_call.1} parent=23 // pred_check
          _
        $region54: #{tpu_custom_call.1} parent=23 // pred_check_branch
          %269 = sbr.rel target = $region56
        $region55: #{tpu_custom_call.1} parent=23 // pred_region
          %270 = sst [smem:[#allocation12]] [#allocation25]
          %271 = sst [smem:[#allocation13]] [#allocation24]
        $region56: #{tpu_custom_call.1} parent=23 // pred_fallthru
          _
        %273 = shalt.err (0)
        %s275 = sshll.u32 %s264, 4
        %s276 = int_to_ptr.hbm [resolvable:$true] %s275
        %s277 = sshll.u32 %s266, 4
        %s278 = int_to_ptr.vmem [resolvable:$true] %s277
        %280 = dma.hbm_to_vmem [thread:$0]  %s276, 16, %s278, %s267
        %s281 = sadd.s32 %s148, 7
        %s282 = sld [smem:[#allocation5 + %s281]]
        %s283 = scalar_lea.hbm %s1, %s282
        %s284 = sadd.s32 7, %s151
        %s285 = scalar_lea.vmem [#allocation2], %s284
        %s286 = scalar_lea.sflag [#allocation3], %s284
        // Predicated region
        $region57: #{tpu_custom_call.1} parent=23 // pred_check
          _
        $region58: #{tpu_custom_call.1} parent=23 // pred_check_branch
          %288 = sbr.rel target = $region60
        $region59: #{tpu_custom_call.1} parent=23 // pred_region
          %289 = sst [smem:[#allocation12]] [#allocation27]
          %290 = sst [smem:[#allocation13]] [#allocation26]
        $region60: #{tpu_custom_call.1} parent=23 // pred_fallthru
          _
        %292 = shalt.err (0)
        %s294 = sshll.u32 %s283, 4
        %s295 = int_to_ptr.hbm [resolvable:$true] %s294
        %s296 = sshll.u32 %s285, 4
        %s297 = int_to_ptr.vmem [resolvable:$true] %s296
        %299 = dma.hbm_to_vmem [thread:$0]  %s295, 16, %s297, %s286
        %s300 = smul.u32 1, 1
        %s301 = sshll.u32 %s300, 4
        %302 = dma.done %s153, %s301
        %s303 = sshll.u32 %s300, 4
        %304 = dma.done %s172, %s303
        %s305 = sshll.u32 %s300, 4
        %306 = dma.done %s191, %s305
        %s307 = sshll.u32 %s300, 4
        %308 = dma.done %s210, %s307
        %s309 = sshll.u32 %s300, 4
        %310 = dma.done %s229, %s309
        %s311 = sshll.u32 %s300, 4
        %312 = dma.done %s248, %s311
        %s313 = sshll.u32 %s300, 4
        %314 = dma.done %s267, %s313
        %s315 = sshll.u32 %s300, 4
        %316 = dma.done %s286, %s315
        %s317 = scalar_lea.vmem [#allocation6], %s146
        %v318 = vld [vmem:[%s317] sm:$0xff]
        %v319 = vld [vmem:[%s152] sm:$0xff]
        %v320 = vadd.f32 %v319, %v318
        %321 = vst [vmem:[%s133] sm:$0xff] %v320
        %s322 = sand.u32 %s69, 1
        %s323 = scalar_lea.sflag [#allocation8], %s322
        %s324 = sand.u32 %s69, 1
        %s325 = smul.addr %s324, 8
        %s326 = scalar_lea.vmem [#allocation9], %s325
        // Predicated region
        $region61: #{tpu_custom_call.1} parent=23 // pred_check
          %p327 = pneg %p79
        $region62: #{tpu_custom_call.1} parent=23 // pred_check_branch
          %329 = sbr.rel (%p327) target = $region64
        $region63: #{tpu_custom_call.1} parent=23 // pred_region
          %331 = vsyncadd %s323, 0
          %s332 = sadd.s32 %s31, %s30
          %s333 = smul.addr %s332, 8
          %s334 = scalar_lea.hbm %s3, %s333
          %s336 = sshll.u32 %s326, 4
          %s337 = int_to_ptr.vmem [resolvable:$true] %s336
          %s338 = sshll.u32 %s334, 4
          %s339 = int_to_ptr.hbm [resolvable:$true] %s338
          %341 = dma.vmem_to_hbm [thread:$0]  %s337, 128, %s339, %s323
        $region64: #{tpu_custom_call.1} parent=23 // pred_fallthru
          _
      $region24: #{tpu_custom_call.1} parent=5 // pred_fallthru
        _
      %p342 = scmp.le.s32.totalorder 2, %s21
      // Predicated region
      $region65: #{tpu_custom_call.1} parent=5 // pred_check
        %p343 = pneg %p342
      $region66: #{tpu_custom_call.1} parent=5 // pred_check_branch
        %345 = sbr.rel (%p343) target = $region68
      $region67: #{tpu_custom_call.1} parent=5 // pred_region
        %s346 = ssub.s32 %s21, 2
        // Predicated region
        $region69: #{tpu_custom_call.1} parent=67 // pred_check
          %p347 = pneg %p85
        $region70: #{tpu_custom_call.1} parent=67 // pred_check_branch
          %349 = sbr.rel (%p347) target = $region72
        $region71: #{tpu_custom_call.1} parent=67 // pred_region
          %s350 = sand.u32 %s70, 1
          %s351 = scalar_lea.sflag [#allocation8], %s350
          %s352 = sand.u32 %s70, 1
          %s353 = smul.addr %s352, 8
          %s354 = scalar_lea.vmem [#allocation9], %s353
          %356 = dma.done %s351, 128
        $region72: #{tpu_custom_call.1} parent=67 // pred_fallthru
          _
      $region68: #{tpu_custom_call.1} parent=5 // pred_fallthru
        _
    $region6: #{tpu_custom_call.1} parent=1 // loop_footer
      %s25 = sadd.s32 1, %s21
    $region7: #{tpu_custom_call.1} parent=1 // loop_footer_branch
      %20 = sbr.rel target = $region3
    $region8: #{tpu_custom_call.1} parent=1 // loop_exit
      _
    %357 = vsyncpa [#allocation7], 1
    %s358 = scalar_lea.sflag [#allocation7], 1
    %359 = vsyncpa %s358, 1
    %360 = vsyncpa [#allocation8], 1
    %s361 = scalar_lea.sflag [#allocation8], 1
    %362 = vsyncpa %s361, 1
  %363 = vsyncmov [#allocation3]
  %s364 = vpop.sfrf %363
  %p365 = scmp.eq.s32.totalorder %s364, 0
  %p366 = pneg %p365
  %368 = shalt.err (%p366)
  %s369 = scalar_lea.sflag [#allocation3], 1
  %370 = vsyncmov %s369
  %s371 = vpop.sfrf %370
  %p372 = scmp.eq.s32.totalorder %s371, 0
  %p373 = pneg %p372
  %375 = shalt.err (%p373)
  %s376 = scalar_lea.sflag [#allocation3], 2
  %377 = vsyncmov %s376
  %s378 = vpop.sfrf %377
  %p379 = scmp.eq.s32.totalorder %s378, 0
  %p380 = pneg %p379
  %382 = shalt.err (%p380)
  %s383 = scalar_lea.sflag [#allocation3], 3
  %384 = vsyncmov %s383
  %s385 = vpop.sfrf %384
  %p386 = scmp.eq.s32.totalorder %s385, 0
  %p387 = pneg %p386
  %389 = shalt.err (%p387)
  %s390 = scalar_lea.sflag [#allocation3], 4
  %391 = vsyncmov %s390
  %s392 = vpop.sfrf %391
  %p393 = scmp.eq.s32.totalorder %s392, 0
  %p394 = pneg %p393
  %396 = shalt.err (%p394)
  %s397 = scalar_lea.sflag [#allocation3], 5
  %398 = vsyncmov %s397
  %s399 = vpop.sfrf %398
  %p400 = scmp.eq.s32.totalorder %s399, 0
  %p401 = pneg %p400
  %403 = shalt.err (%p401)
  %s404 = scalar_lea.sflag [#allocation3], 6
  %405 = vsyncmov %s404
  %s406 = vpop.sfrf %405
  %p407 = scmp.eq.s32.totalorder %s406, 0
  %p408 = pneg %p407
  %410 = shalt.err (%p408)
  %s411 = scalar_lea.sflag [#allocation3], 7
  %412 = vsyncmov %s411
  %s413 = vpop.sfrf %412
  %p414 = scmp.eq.s32.totalorder %s413, 0
  %p415 = pneg %p414
  %417 = shalt.err (%p415)
  %s418 = scalar_lea.sflag [#allocation3], 8
  %419 = vsyncmov %s418
  %s420 = vpop.sfrf %419
  %p421 = scmp.eq.s32.totalorder %s420, 0
  %p422 = pneg %p421
  %424 = shalt.err (%p422)
  %s425 = scalar_lea.sflag [#allocation3], 9
  %426 = vsyncmov %s425
  %s427 = vpop.sfrf %426
  %p428 = scmp.eq.s32.totalorder %s427, 0
  %p429 = pneg %p428
  %431 = shalt.err (%p429)
  %s432 = scalar_lea.sflag [#allocation3], 10
  %433 = vsyncmov %s432
  %s434 = vpop.sfrf %433
  %p435 = scmp.eq.s32.totalorder %s434, 0
  %p436 = pneg %p435
  %438 = shalt.err (%p436)
  %s439 = scalar_lea.sflag [#allocation3], 11
  %440 = vsyncmov %s439
  %s441 = vpop.sfrf %440
  %p442 = scmp.eq.s32.totalorder %s441, 0
  %p443 = pneg %p442
  %445 = shalt.err (%p443)
  %s446 = scalar_lea.sflag [#allocation3], 12
  %447 = vsyncmov %s446
  %s448 = vpop.sfrf %447
  %p449 = scmp.eq.s32.totalorder %s448, 0
  %p450 = pneg %p449
  %452 = shalt.err (%p450)
  %s453 = scalar_lea.sflag [#allocation3], 13
  %454 = vsyncmov %s453
  %s455 = vpop.sfrf %454
  %p456 = scmp.eq.s32.totalorder %s455, 0
  %p457 = pneg %p456
  %459 = shalt.err (%p457)
  %s460 = scalar_lea.sflag [#allocation3], 14
  %461 = vsyncmov %s460
  %s462 = vpop.sfrf %461
  %p463 = scmp.eq.s32.totalorder %s462, 0
  %p464 = pneg %p463
  %466 = shalt.err (%p464)
  %s467 = scalar_lea.sflag [#allocation3], 15
  %468 = vsyncmov %s467
  %s469 = vpop.sfrf %468
  %p470 = scmp.eq.s32.totalorder %s469, 0
  %p471 = pneg %p470
  %473 = shalt.err (%p471)

</llo_original>
